<compile_context>
chip_gen: v7x
topology: tpu7x:2x2x1
jax: 0.10.0
libtpu: 0.0.40
codegen_flags: <defaults>
</compile_context>

<pallas_src>
import jax
import jax.numpy as jnp
from jax.experimental import pallas as pl
from jax.experimental.pallas import tpu as pltpu

VMEM = pltpu.MemorySpace.VMEM


# ---------------------------------------------------------------------------
# Single fused kernel: conv1+ReLU, conv2+ReLU, fc1+ReLU, fc2+ReLU, fc3+softmax
# (convs are pre-lowered to dense matrices, so the whole net is 5 MXU matmuls)
# ---------------------------------------------------------------------------
def _net_kernel(x_ref,
                w1_ref, b1_ref,    # conv1 as dense: (100, 256), (1, 256)
                w2_ref, b2_ref,    # conv2 as dense: (256, 288), (1, 288)
                w3_ref, b3_ref,    # fc1 padded:     (288, 128), (1, 128)
                w4_ref, b4_ref,    # fc2 padded:     (128, 128), (1, 128)
                w5_ref, b5_ref,    # fc3 padded:     (128, 128), (1, 128)
                out_ref):          # (B_pad, 128)
    def dense(h, w_ref, b_ref):
        return jnp.dot(h, w_ref[...], preferred_element_type=jnp.float32) + b_ref[...]

    h = jnp.maximum(dense(x_ref[...], w1_ref, b1_ref), 0.0)   # conv1 + ReLU
    h = jnp.maximum(dense(h, w2_ref, b2_ref), 0.0)            # conv2 + ReLU
    h = jnp.maximum(dense(h, w3_ref, b3_ref), 0.0)            # fc1   + ReLU
    h = jnp.maximum(dense(h, w4_ref, b4_ref), 0.0)            # fc2   + ReLU
    logits = dense(h, w5_ref, b5_ref)                         # fc3 (pad cols -> -1e30 bias)

    # softmax over the 128 lanes; padded columns contribute exp(-huge) == 0
    m = jnp.max(logits, axis=-1, keepdims=True)
    e = jnp.exp(logits - m)
    inv = pl.reciprocal(jnp.sum(e, axis=-1, keepdims=True), approx=True)
    out_ref[...] = e * inv


# ---------------------------------------------------------------------------
# One-time parameter preparation (outside the jitted forward):
#   * convs -> exact dense matrices (conv applied to an identity basis)
#   * fc weights pre-transposed to (in, out) and zero-padded to width 128
#   * fc3 padded bias columns set to -1e30 so softmax masks them to 0
# ---------------------------------------------------------------------------
def prepare_params(p):
    f32 = jnp.float32

    def conv_as_matrix(w, in_shape):
        n_in = in_shape[0] * in_shape[1] * in_shape[2]
        basis = jnp.eye(n_in, dtype=f32).reshape((n_in,) + in_shape)
        out = jax.lax.conv_general_dilated(
            basis, w, (1, 1), "VALID",
            dimension_numbers=("NCHW", "OIHW", "NCHW"),
            precision=jax.lax.Precision.HIGHEST)
        # rows: flattened (C,H,W) input index; cols: flattened (C,H,W) output index
        return out.reshape(n_in, -1)

    # conv1: (B,100) -> (B,256), columns in CHW order of (4,8,8)
    w1 = conv_as_matrix(p["conv1_w"], (1, 10, 10))            # (100, 256)
    b1 = jnp.repeat(p["conv1_b"].astype(f32), 64).reshape(1, 256)
    # conv2: (B,256) -> (B,288), columns in CHW order of (8,6,6)
    #        == exactly torch's x.view(-1, 288) flatten order, so fc1 needs no permute
    w2 = conv_as_matrix(p["conv2_w"], (4, 8, 8))              # (256, 288)
    b2 = jnp.repeat(p["conv2_b"].astype(f32), 36).reshape(1, 288)

    # fc1: 288 -> 120, padded to 128 output lanes
    w3 = jnp.zeros((288, 128), f32).at[:, :120].set(p["fc1_w"].T)
    b3 = jnp.zeros((1, 128), f32).at[0, :120].set(p["fc1_b"])
    # fc2: 120 -> 64, padded to 128 x 128
    w4 = jnp.zeros((128, 128), f32).at[:120, :64].set(p["fc2_w"].T)
    b4 = jnp.zeros((1, 128), f32).at[0, :64].set(p["fc2_b"])
    # fc3: 64 -> 4, padded to 128 x 128; padded logits forced to -1e30
    w5 = jnp.zeros((128, 128), f32).at[:64, :4].set(p["fc3_w"].T)
    b5 = jnp.full((1, 128), -1e30, f32).at[0, :4].set(p["fc3_b"])

    return dict(w1=w1, b1=b1, w2=w2, b2=b2, w3=w3, b3=b3,
                w4=w4, b4=b4, w5=w5, b5=b5)


# ---------------------------------------------------------------------------
# Jitted forward: one pallas_call, whole-array VMEM blocks, no grid.
# ---------------------------------------------------------------------------
@jax.jit
def net_forward(x, kp):
    B = x.shape[0]
    xf = x.reshape(B, -1)                    # NCHW contiguous -> (B, 100) (bitcast)
    pad = (-B) % 8                           # sublane-align the batch dimension
    if pad:
        xf = jnp.pad(xf, ((0, pad), (0, 0)))
    bp = B + pad

    out = pl.pallas_call(
        _net_kernel,
        out_shape=jax.ShapeDtypeStruct((bp, 128), jnp.float32),
        in_specs=[pl.BlockSpec(memory_space=VMEM)] * 11,
        out_specs=pl.BlockSpec(memory_space=VMEM),
    )(xf,
      kp["w1"], kp["b1"], kp["w2"], kp["b2"],
      kp["w3"], kp["b3"], kp["w4"], kp["b4"],
      kp["w5"], kp["b5"])

    return out[:B, :4]


# ---------------------------------------------------------------------------
# Deterministic parameter init (PyTorch-like uniform(-1/sqrt(fan_in), ...))
# ---------------------------------------------------------------------------
def init_params(key):
    def uinit(k, shape, fan_in):
        bound = 1.0 / (fan_in ** 0.5)
        return jax.random.uniform(k, shape, jnp.float32, -bound, bound)

    ks = jax.random.split(key, 10)
    return dict(
        conv1_w=uinit(ks[0], (4, 1, 3, 3), 9),
        conv1_b=uinit(ks[1], (4,), 9),
        conv2_w=uinit(ks[2], (8, 4, 3, 3), 36),
        conv2_b=uinit(ks[3], (8,), 36),
        fc1_w=uinit(ks[4], (120, 288), 288),
        fc1_b=uinit(ks[5], (120,), 288),
        fc2_w=uinit(ks[6], (64, 120), 120),
        fc2_b=uinit(ks[7], (64,), 120),
        fc3_w=uinit(ks[8], (4, 64), 64),
        fc3_b=uinit(ks[9], (4,), 64),
    )


# Pure-JAX reference replicating the PyTorch forward (for correctness check).
def reference_forward(x, p):
    def conv(h, w, b):
        y = jax.lax.conv_general_dilated(
            h, w, (1, 1), "VALID",
            dimension_numbers=("NCHW", "OIHW", "NCHW"),
            precision=jax.lax.Precision.HIGHEST)
        return y + b[None, :, None, None]

    mm = lambda a, b: jnp.dot(a, b, precision=jax.lax.Precision.HIGHEST)
    h = jax.nn.relu(conv(x, p["conv1_w"], p["conv1_b"]))
    h = jax.nn.relu(conv(h, p["conv2_w"], p["conv2_b"]))
    h = h.reshape(x.shape[0], -1)
    h = jax.nn.relu(mm(h, p["fc1_w"].T) + p["fc1_b"])
    h = jax.nn.relu(mm(h, p["fc2_w"].T) + p["fc2_b"])
    logits = mm(h, p["fc3_w"].T) + p["fc3_b"]
    return jax.nn.softmax(logits, axis=-1)


if __name__ == "__main__":
    key = jax.random.PRNGKey(0)
    k_params, k_x = jax.random.split(key)
    params = init_params(k_params)
    kernel_params = prepare_params(params)   # one-time prep, outside the jitted forward

    # fc1 expects 288 = 8*6*6 flattened features => input spatial is 10x10.
    x = jax.random.normal(k_x, (2, 1, 10, 10), dtype=jnp.float32)

    out = net_forward(x, kernel_params)
    out = jax.block_until_ready(out)

    ref = reference_forward(x, params)
    assert out.shape == (2, 4), f"bad output shape: {out.shape}"
    max_err = float(jnp.max(jnp.abs(out - ref)))
    row_sum_err = float(jnp.max(jnp.abs(jnp.sum(out, axis=-1) - 1.0)))
    assert max_err < 2e-3, f"mismatch vs reference: {max_err}"
    assert row_sum_err < 2e-3, f"softmax rows do not sum to 1: {row_sum_err}"

    print("KERNEL_OK")
</pallas_src>

<mosaic_0001>
module attributes {stable_mosaic.version = 11 : i64} {
  func.func @_net_kernel(%arg0: memref<8x100xf32, #tpu.memory_space<vmem>>, %arg1: memref<100x256xf32, #tpu.memory_space<vmem>>, %arg2: memref<1x256xf32, #tpu.memory_space<vmem>>, %arg3: memref<256x288xf32, #tpu.memory_space<vmem>>, %arg4: memref<1x288xf32, #tpu.memory_space<vmem>>, %arg5: memref<288x128xf32, #tpu.memory_space<vmem>>, %arg6: memref<1x128xf32, #tpu.memory_space<vmem>>, %arg7: memref<128x128xf32, #tpu.memory_space<vmem>>, %arg8: memref<1x128xf32, #tpu.memory_space<vmem>>, %arg9: memref<128x128xf32, #tpu.memory_space<vmem>>, %arg10: memref<1x128xf32, #tpu.memory_space<vmem>>, %arg11: memref<8x128xf32, #tpu.memory_space<vmem>>) attributes {dimension_semantics = [], scalar_prefetch = 0 : i64, scratch_operands = 0 : i64, tpu.core_type = #tpu.core_type<tc>} {
    %c0 = arith.constant 0 : index
    %c0_0 = arith.constant 0 : index
    %0 = vector.load %arg0[%c0, %c0_0] : memref<8x100xf32, #tpu.memory_space<vmem>>, vector<8x100xf32>
    %c0_1 = arith.constant 0 : index
    %c0_2 = arith.constant 0 : index
    %1 = vector.load %arg1[%c0_1, %c0_2] : memref<100x256xf32, #tpu.memory_space<vmem>>, vector<100x256xf32>
    %cst = arith.constant dense<0.000000e+00> : vector<8x256xf32>
    %2 = tpu.matmul %0, %1, %cst {dimension_numbers = #tpu.dot_dimension_numbers<[1], [0], [0], [1], [0, 0, 1, 1], [], []>} : vector<8x100xf32>, vector<100x256xf32>, vector<8x256xf32> -> vector<8x256xf32>
    %c0_3 = arith.constant 0 : index
    %c0_4 = arith.constant 0 : index
    %3 = vector.load %arg2[%c0_3, %c0_4] : memref<1x256xf32, #tpu.memory_space<vmem>>, vector<1x256xf32>
    %4 = vector.broadcast %3 : vector<1x256xf32> to vector<8x256xf32>
    %5 = arith.addf %2, %4 : vector<8x256xf32>
    %cst_5 = arith.constant 0.000000e+00 : f32
    %6 = vector.broadcast %cst_5 : f32 to vector<8x256xf32>
    %7 = arith.maximumf %5, %6 : vector<8x256xf32>
    %c0_6 = arith.constant 0 : index
    %c0_7 = arith.constant 0 : index
    %8 = vector.load %arg3[%c0_6, %c0_7] : memref<256x288xf32, #tpu.memory_space<vmem>>, vector<256x288xf32>
    %cst_8 = arith.constant dense<0.000000e+00> : vector<8x288xf32>
    %9 = tpu.matmul %7, %8, %cst_8 {dimension_numbers = #tpu.dot_dimension_numbers<[1], [0], [0], [1], [0, 0, 1, 1], [], []>} : vector<8x256xf32>, vector<256x288xf32>, vector<8x288xf32> -> vector<8x288xf32>
    %c0_9 = arith.constant 0 : index
    %c0_10 = arith.constant 0 : index
    %10 = vector.load %arg4[%c0_9, %c0_10] : memref<1x288xf32, #tpu.memory_space<vmem>>, vector<1x288xf32>
    %11 = vector.broadcast %10 : vector<1x288xf32> to vector<8x288xf32>
    %12 = arith.addf %9, %11 : vector<8x288xf32>
    %cst_11 = arith.constant 0.000000e+00 : f32
    %13 = vector.broadcast %cst_11 : f32 to vector<8x288xf32>
    %14 = arith.maximumf %12, %13 : vector<8x288xf32>
    %c0_12 = arith.constant 0 : index
    %c0_13 = arith.constant 0 : index
    %15 = vector.load %arg5[%c0_12, %c0_13] : memref<288x128xf32, #tpu.memory_space<vmem>>, vector<288x128xf32>
    %cst_14 = arith.constant dense<0.000000e+00> : vector<8x128xf32>
    %16 = tpu.matmul %14, %15, %cst_14 {dimension_numbers = #tpu.dot_dimension_numbers<[1], [0], [0], [1], [0, 0, 1, 1], [], []>} : vector<8x288xf32>, vector<288x128xf32>, vector<8x128xf32> -> vector<8x128xf32>
    %c0_15 = arith.constant 0 : index
    %c0_16 = arith.constant 0 : index
    %17 = vector.load %arg6[%c0_15, %c0_16] : memref<1x128xf32, #tpu.memory_space<vmem>>, vector<1x128xf32>
    %18 = vector.broadcast %17 : vector<1x128xf32> to vector<8x128xf32>
    %19 = arith.addf %16, %18 : vector<8x128xf32>
    %cst_17 = arith.constant 0.000000e+00 : f32
    %20 = vector.broadcast %cst_17 : f32 to vector<8x128xf32>
    %21 = arith.maximumf %19, %20 : vector<8x128xf32>
    %c0_18 = arith.constant 0 : index
    %c0_19 = arith.constant 0 : index
    %22 = vector.load %arg7[%c0_18, %c0_19] : memref<128x128xf32, #tpu.memory_space<vmem>>, vector<128x128xf32>
    %cst_20 = arith.constant dense<0.000000e+00> : vector<8x128xf32>
    %23 = tpu.matmul %21, %22, %cst_20 {dimension_numbers = #tpu.dot_dimension_numbers<[1], [0], [0], [1], [0, 0, 1, 1], [], []>} : vector<8x128xf32>, vector<128x128xf32>, vector<8x128xf32> -> vector<8x128xf32>
    %c0_21 = arith.constant 0 : index
    %c0_22 = arith.constant 0 : index
    %24 = vector.load %arg8[%c0_21, %c0_22] : memref<1x128xf32, #tpu.memory_space<vmem>>, vector<1x128xf32>
    %25 = vector.broadcast %24 : vector<1x128xf32> to vector<8x128xf32>
    %26 = arith.addf %23, %25 : vector<8x128xf32>
    %cst_23 = arith.constant 0.000000e+00 : f32
    %27 = vector.broadcast %cst_23 : f32 to vector<8x128xf32>
    %28 = arith.maximumf %26, %27 : vector<8x128xf32>
    %c0_24 = arith.constant 0 : index
    %c0_25 = arith.constant 0 : index
    %29 = vector.load %arg9[%c0_24, %c0_25] : memref<128x128xf32, #tpu.memory_space<vmem>>, vector<128x128xf32>
    %cst_26 = arith.constant dense<0.000000e+00> : vector<8x128xf32>
    %30 = tpu.matmul %28, %29, %cst_26 {dimension_numbers = #tpu.dot_dimension_numbers<[1], [0], [0], [1], [0, 0, 1, 1], [], []>} : vector<8x128xf32>, vector<128x128xf32>, vector<8x128xf32> -> vector<8x128xf32>
    %c0_27 = arith.constant 0 : index
    %c0_28 = arith.constant 0 : index
    %31 = vector.load %arg10[%c0_27, %c0_28] : memref<1x128xf32, #tpu.memory_space<vmem>>, vector<1x128xf32>
    %32 = vector.broadcast %31 : vector<1x128xf32> to vector<8x128xf32>
    %33 = arith.addf %30, %32 : vector<8x128xf32>
    %cst_29 = arith.constant dense<0xFF800000> : vector<8xf32>
    %34 = vector.multi_reduction <maximumf>, %33, %cst_29 [1] : vector<8x128xf32> to vector<8xf32>
    %35 = vector.shape_cast %34 : vector<8xf32> to vector<8x1xf32>
    %36 = vector.broadcast %35 : vector<8x1xf32> to vector<8x128xf32>
    %37 = arith.subf %33, %36 : vector<8x128xf32>
    %38 = math.exp %37 : vector<8x128xf32>
    %cst_30 = arith.constant dense<0.000000e+00> : vector<8xf32>
    %39 = vector.multi_reduction <add>, %38, %cst_30 [1] : vector<8x128xf32> to vector<8xf32>
    %40 = vector.shape_cast %39 : vector<8xf32> to vector<8x1xf32>
    %41 = tpu.reciprocal %40 {approx = true} : vector<8x1xf32> -> vector<8x1xf32>
    %42 = vector.broadcast %41 : vector<8x1xf32> to vector<8x128xf32>
    %43 = arith.mulf %38, %42 : vector<8x128xf32>
    %c0_31 = arith.constant 0 : index
    %c0_32 = arith.constant 0 : index
    %44 = vector.load %arg11[%c0_31, %c0_32] : memref<8x128xf32, #tpu.memory_space<vmem>>, vector<8x128xf32>
    tpu.vector_store %arg11[%c0_31, %c0_32], %43 {strides = array<i32>} : memref<8x128xf32, #tpu.memory_space<vmem>>, vector<8x128xf32>,
    return
  }
}

</mosaic_0001>

<llo_original>
// kernel: net_forward.1
$region0: #{net_forward.1}
  #allocation0 [shape = 'u32[]', space=smem, size = 0x4, offset = 0x4, fixed_abs, tag = 'smem constant byte address 0x4 - core index']
  #allocation1 [shape = 'u32[144,128]{1,0:T(1,128)}', space=vmem, size = 0x12000, scoped, tag = 'internal scratch']
  %s0 = inlined_call_operand.vmem [shape: f32[8,100], index: 0, kind: input, shape index: {}]
  %s1 = inlined_call_operand.vmem [shape: f32[100,256], index: 1, kind: input, shape index: {}]
  %s2 = inlined_call_operand.vmem [shape: f32[1,256], index: 2, kind: input, shape index: {}]
  %s3 = inlined_call_operand.vmem [shape: f32[256,288], index: 3, kind: input, shape index: {}]
  %s4 = inlined_call_operand.vmem [shape: f32[1,288], index: 4, kind: input, shape index: {}]
  %s5 = inlined_call_operand.vmem [shape: f32[288,128], index: 5, kind: input, shape index: {}]
  %s6 = inlined_call_operand.vmem [shape: f32[1,128], index: 6, kind: input, shape index: {}]
  %s7 = inlined_call_operand.vmem [shape: f32[128,128], index: 7, kind: input, shape index: {}]
  %s8 = inlined_call_operand.vmem [shape: f32[1,128], index: 8, kind: input, shape index: {}]
  %s9 = inlined_call_operand.vmem [shape: f32[128,128], index: 9, kind: input, shape index: {}]
  %s10 = inlined_call_operand.vmem [shape: f32[1,128], index: 10, kind: input, shape index: {}]
  %s11 = inlined_call_operand.vmem [shape: f32[8,128], index: 11, kind: output, shape index: {}]
  %s12 = sld [smem:[#allocation0]]
  $region54: #{net_forward.1} parent=0
    _
  %s14 = ssub.s32 1, %s12
  %s15 = scalar_select 0, %s14, %s12
  // Predicated region
  $region2: #{net_forward.1} parent=0 // pred_check
    _
  $region3: #{net_forward.1} parent=0 // pred_check_branch
    %17 = sbr.rel (0) target = $region5
  $region4: #{net_forward.1} parent=0 // pred_region
    _
  $region5: #{net_forward.1} parent=0 // pred_fallthru
    _
  // Predicated region
  $region6: #{net_forward.1} parent=0 // pred_check
    _
  $region7: #{net_forward.1} parent=0 // pred_check_branch
    %19 = sbr.rel (0) target = $region9
  $region8: #{net_forward.1} parent=0 // pred_region
    _
  $region9: #{net_forward.1} parent=0 // pred_fallthru
    _
  // Predicated region
  $region10: #{net_forward.1} parent=0 // pred_check
    _
  $region11: #{net_forward.1} parent=0 // pred_check_branch
    %21 = sbr.rel (0) target = $region13
  $region12: #{net_forward.1} parent=0 // pred_region
    _
  $region13: #{net_forward.1} parent=0 // pred_fallthru
    _
  // Predicated region
  $region14: #{net_forward.1} parent=0 // pred_check
    _
  $region15: #{net_forward.1} parent=0 // pred_check_branch
    %23 = sbr.rel (0) target = $region17
  $region16: #{net_forward.1} parent=0 // pred_region
    _
  $region17: #{net_forward.1} parent=0 // pred_fallthru
    _
  // Predicated region
  $region18: #{net_forward.1} parent=0 // pred_check
    _
  $region19: #{net_forward.1} parent=0 // pred_check_branch
    %25 = sbr.rel (0) target = $region21
  $region20: #{net_forward.1} parent=0 // pred_region
    _
  $region21: #{net_forward.1} parent=0 // pred_fallthru
    _
  // Predicated region
  $region22: #{net_forward.1} parent=0 // pred_check
    _
  $region23: #{net_forward.1} parent=0 // pred_check_branch
    %27 = sbr.rel (0) target = $region25
  $region24: #{net_forward.1} parent=0 // pred_region
    _
  $region25: #{net_forward.1} parent=0 // pred_fallthru
    _
  // Predicated region
  $region26: #{net_forward.1} parent=0 // pred_check
    _
  $region27: #{net_forward.1} parent=0 // pred_check_branch
    %29 = sbr.rel (0) target = $region29
  $region28: #{net_forward.1} parent=0 // pred_region
    _
  $region29: #{net_forward.1} parent=0 // pred_fallthru
    _
  // Predicated region
  $region30: #{net_forward.1} parent=0 // pred_check
    _
  $region31: #{net_forward.1} parent=0 // pred_check_branch
    %31 = sbr.rel (0) target = $region33
  $region32: #{net_forward.1} parent=0 // pred_region
    _
  $region33: #{net_forward.1} parent=0 // pred_fallthru
    _
  // Predicated region
  $region34: #{net_forward.1} parent=0 // pred_check
    _
  $region35: #{net_forward.1} parent=0 // pred_check_branch
    %33 = sbr.rel (0) target = $region37
  $region36: #{net_forward.1} parent=0 // pred_region
    _
  $region37: #{net_forward.1} parent=0 // pred_fallthru
    _
  // Predicated region
  $region38: #{net_forward.1} parent=0 // pred_check
    _
  $region39: #{net_forward.1} parent=0 // pred_check_branch
    %35 = sbr.rel (0) target = $region41
  $region40: #{net_forward.1} parent=0 // pred_region
    _
  $region41: #{net_forward.1} parent=0 // pred_fallthru
    _
  // Predicated region
  $region42: #{net_forward.1} parent=0 // pred_check
    _
  $region43: #{net_forward.1} parent=0 // pred_check_branch
    %37 = sbr.rel (0) target = $region45
  $region44: #{net_forward.1} parent=0 // pred_region
    _
  $region45: #{net_forward.1} parent=0 // pred_fallthru
    _
  %v38 = vld [vmem:[%s0] sm:$0xff]
  %v39 = vld [vmem:[%s1] sm:$0xff]
  %v40 = vld [vmem:[%s1 + $0x8] sm:$0xff]
  %v41 = vld [vmem:[%s1 + $0x10] sm:$0xff]
  %v42 = vld [vmem:[%s1 + $0x18] sm:$0xff]
  %v43 = vld [vmem:[%s1 + $0x20] sm:$0xff]
  %v44 = vld [vmem:[%s1 + $0x28] sm:$0xff]
  %v45 = vld [vmem:[%s1 + $0x30] sm:$0xff]
  %v46 = vld [vmem:[%s1 + $0x38] sm:$0xff]
  %v47 = vld [vmem:[%s1 + $0x40] sm:$0xff]
  %v48 = vld [vmem:[%s1 + $0x48] sm:$0xff]
  %v49 = vld [vmem:[%s1 + $0x50] sm:$0xff]
  %v50 = vld [vmem:[%s1 + $0x58] sm:$0xff]
  %v51 = vld [vmem:[%s1 + $0x60] sm:$0xff]
  %v52 = vld [vmem:[%s1 + $0x68] sm:$0xff]
  %v53 = vld [vmem:[%s1 + $0x70] sm:$0xff]
  %v54 = vld [vmem:[%s1 + $0x78] sm:$0xff]
  %v55 = vld [vmem:[%s1 + $0x80] sm:$0xff]
  %v56 = vld [vmem:[%s1 + $0x88] sm:$0xff]
  %v57 = vld [vmem:[%s1 + $0x90] sm:$0xff]
  %v58 = vld [vmem:[%s1 + $0x98] sm:$0xff]
  %v59 = vld [vmem:[%s1 + $0xa0] sm:$0xff]
  %v60 = vld [vmem:[%s1 + $0xa8] sm:$0xff]
  %v61 = vld [vmem:[%s1 + $0xb0] sm:$0xff]
  %v62 = vld [vmem:[%s1 + $0xb8] sm:$0xff]
  %v63 = vld [vmem:[%s1 + $0xc0] sm:$0xf]
  %v64 = vld [vmem:[%s1 + $0xc8] sm:$0xf]
  %v65 = vld [vmem:[%s2] sm:$0x3]
  %v67 = vlaneseq
  %v68 = vshrl.u32 %v67, 7
  %v69 = vsub.s32 0, %v68
  %v70 = vrot.slane %v65, %v69
  %v71 = vlaneseq
  %v72 = vshrl.u32 %v71, 7
  %v73 = vsub.s32 1, %v72
  %v74 = vrot.slane %v65, %v73
  %vm77 = vcmask 818176
  %v79 = vsel %vm77, %v38, 0
  %vm81 = vcmask 1043456
  %v83 = vsel %vm81, %v63, 0
  %v86 = vsel %vm81, %v64, 0
  %88 = vmatprep.subr.mxu0 %v40
  %89 = vmatpush1.msra.mxu0 %v39
  %90 = vmatprep.subr.mxu0 %v42
  %91 = vmatpush1.msra.mxu0 %v41
  %92 = vmatprep.subr.mxu0 %v44
  %93 = vmatpush1.msra.mxu0 %v43
  %94 = vmatprep.subr.mxu0 %v46
  %95 = vmatpush1.msra.mxu0 %v45
  %96 = vmatprep.subr.mxu0 %v48
  %97 = vmatpush1.msra.mxu0 %v47
  %98 = vmatprep.subr.mxu0 %v50
  %99 = vmatpush1.msra.mxu0 %v49
  %100 = vmatprep.subr.mxu0 %v52
  %101 = vmatpush1.msra.mxu0 %v51
  %102 = vmatprep.subr.mxu0 %v54
  %103 = vmatpush1.msra.mxu0 %v53
  %104 = vmatprep.subr.mxu0 %v56
  %105 = vmatpush1.msra.mxu0 %v55
  %106 = vmatprep.subr.mxu0 %v58
  %107 = vmatpush1.msra.mxu0 %v57
  %108 = vmatprep.subr.mxu0 %v60
  %109 = vmatpush1.msra.mxu0 %v59
  %110 = vmatprep.subr.mxu0 %v62
  %111 = vmatpush1.msra.mxu0 %v61
  %112 = vmatprep.subr.mxu0 %v86
  %113 = vmatpush1.msra.mxu0 %v83
  %114 = vmatprep.subr.mxu0 0.0
  %115 = vmatpush1.msra.mxu0 0.0
  %116 = vmatprep.subr.mxu0 0.0
  %117 = vmatpush1.msra.mxu0 0.0
  %118 = vmatprep.subr.mxu0 0.0
  %119 = vmatpush1.msra.mxu0 0.0
  %120 = vmatprep.subr.mxu0 0.0
  %121 = vmatpush1.msra.mxu0 0.0
  %122 = vmatprep.subr.mxu0 0.0
  %123 = vmatpush1.msra.mxu0 0.0
  %124 = vmatprep.subr.mxu0 0.0
  %125 = vmatpush1.msra.mxu0 0.0
  %126 = vmatprep.subr.mxu0 0.0
  %127 = vmatpush1.msra.mxu0 0.0
  %128 = vmatprep.subr.mxu0 0.0
  %129 = vmatpush1.msra.mxu0 0.0
  %130 = vmatprep.subr.mxu0 0.0
  %131 = vmatpush1.msra.mxu0 0.0
  %132 = vmatprep.subr.mxu0 0.0
  %133 = vmatpush1.msra.mxu0 0.0
  %134 = vmatprep.subr.mxu0 0.0
  %135 = vmatpush1.msra.mxu0 0.0
  %136 = vmatprep.subr.mxu0 0.0
  %137 = vmatpush1.msra.mxu0 0.0
  %138 = vmatprep.subr.mxu0 0.0
  %139 = vmatpush1.msra.mxu0 0.0
  %140 = vmatprep.subr.mxu0 0.0
  %141 = vmatpush1.msra.mxu0 0.0
  %142 = vmatprep.subr.mxu0 0.0
  %143 = vmatpush1.msra.mxu0 0.0
  %144 = vmatprep.subr.mxu0 0.0
  %145 = vmatpush1.msra.mxu0 0.0
  %146 = vmatprep.subr.mxu0 0.0
  %147 = vmatpush1.msra.mxu0 0.0
  %148 = vmatprep.subr.mxu0 0.0
  %149 = vmatpush1.msra.mxu0 0.0
  %150 = vmatprep.subr.mxu0 0.0
  %151 = vmatpush1.msra.mxu0 0.0
  %152 = vmatprep.mubr.f32.mxu0 0.0
  %153 = vmatmul.mubr.f32.gmra.mrb[0].mxu0 %v79
  %v154 = vpop.f32.mrb[0].mxu0
  %v155 = vadd.f32 %v70, %v154
  %v156 = vpop.f32.mrb[0].mxu0
  %v157 = vadd.f32 %v74, %v156
  %158 = vdwg.mxu0
  %v159 = vmax.f32 %v155, 0.0
  %v160 = vmax.f32 %v157, 0.0
  %v161 = vld [vmem:[%s3] sm:$0xff]
  %v162 = vld [vmem:[%s3 + $0x8] sm:$0xff]
  %v163 = vld [vmem:[%s3 + $0x10] sm:$0xff]
  %v164 = vld [vmem:[%s3 + $0x18] sm:$0xff]
  %v165 = vld [vmem:[%s3 + $0x20] sm:$0xff]
  %v166 = vld [vmem:[%s3 + $0x28] sm:$0xff]
  %v167 = vld [vmem:[%s3 + $0x30] sm:$0xff]
  %v168 = vld [vmem:[%s3 + $0x38] sm:$0xff]
  %v169 = vld [vmem:[%s3 + $0x40] sm:$0xff]
  %v170 = vld [vmem:[%s3 + $0x48] sm:$0xff]
  %v171 = vld [vmem:[%s3 + $0x50] sm:$0xff]
  %v172 = vld [vmem:[%s3 + $0x58] sm:$0xff]
  %v173 = vld [vmem:[%s3 + $0x60] sm:$0xff]
  %v174 = vld [vmem:[%s3 + $0x68] sm:$0xff]
  %v175 = vld [vmem:[%s3 + $0x70] sm:$0xff]
  %v176 = vld [vmem:[%s3 + $0x78] sm:$0xff]
  %v177 = vld [vmem:[%s3 + $0x80] sm:$0xff]
  %v178 = vld [vmem:[%s3 + $0x88] sm:$0xff]
  %v179 = vld [vmem:[%s3 + $0x90] sm:$0xff]
  %v180 = vld [vmem:[%s3 + $0x98] sm:$0xff]
  %v181 = vld [vmem:[%s3 + $0xa0] sm:$0xff]
  %v182 = vld [vmem:[%s3 + $0xa8] sm:$0xff]
  %v183 = vld [vmem:[%s3 + $0xb0] sm:$0xff]
  %v184 = vld [vmem:[%s3 + $0xb8] sm:$0xff]
  %v185 = vld [vmem:[%s3 + $0xc0] sm:$0xff]
  %v186 = vld [vmem:[%s3 + $0xc8] sm:$0xff]
  %v187 = vld [vmem:[%s3 + $0xd0] sm:$0xff]
  %v188 = vld [vmem:[%s3 + $0xd8] sm:$0xff]
  %v189 = vld [vmem:[%s3 + $0xe0] sm:$0xff]
  %v190 = vld [vmem:[%s3 + $0xe8] sm:$0xff]
  %v191 = vld [vmem:[%s3 + $0xf0] sm:$0xff]
  %v192 = vld [vmem:[%s3 + $0xf8] sm:$0xff]
  %v193 = vld [vmem:[%s3 + $0x100] sm:$0xff]
  %v194 = vld [vmem:[%s3 + $0x108] sm:$0xff]
  %v195 = vld [vmem:[%s3 + $0x110] sm:$0xff]
  %v196 = vld [vmem:[%s3 + $0x118] sm:$0xff]
  %v197 = vld [vmem:[%s3 + $0x120] sm:$0xff]
  %v198 = vld [vmem:[%s3 + $0x128] sm:$0xff]
  %v199 = vld [vmem:[%s3 + $0x130] sm:$0xff]
  %v200 = vld [vmem:[%s3 + $0x138] sm:$0xff]
  %v201 = vld [vmem:[%s3 + $0x140] sm:$0xff]
  %v202 = vld [vmem:[%s3 + $0x148] sm:$0xff]
  %v203 = vld [vmem:[%s3 + $0x150] sm:$0xff]
  %v204 = vld [vmem:[%s3 + $0x158] sm:$0xff]
  %v205 = vld [vmem:[%s3 + $0x160] sm:$0xff]
  %v206 = vld [vmem:[%s3 + $0x168] sm:$0xff]
  %v207 = vld [vmem:[%s3 + $0x170] sm:$0xff]
  %v208 = vld [vmem:[%s3 + $0x178] sm:$0xff]
  %v209 = vld [vmem:[%s3 + $0x180] sm:$0xff]
  %v210 = vld [vmem:[%s3 + $0x188] sm:$0xff]
  %v211 = vld [vmem:[%s3 + $0x190] sm:$0xff]
  %v212 = vld [vmem:[%s3 + $0x198] sm:$0xff]
  %v213 = vld [vmem:[%s3 + $0x1a0] sm:$0xff]
  %v214 = vld [vmem:[%s3 + $0x1a8] sm:$0xff]
  %v215 = vld [vmem:[%s3 + $0x1b0] sm:$0xff]
  %v216 = vld [vmem:[%s3 + $0x1b8] sm:$0xff]
  %v217 = vld [vmem:[%s3 + $0x1c0] sm:$0xff]
  %v218 = vld [vmem:[%s3 + $0x1c8] sm:$0xff]
  %v219 = vld [vmem:[%s3 + $0x1d0] sm:$0xff]
  %v220 = vld [vmem:[%s3 + $0x1d8] sm:$0xff]
  %v221 = vld [vmem:[%s3 + $0x1e0] sm:$0xff]
  %v222 = vld [vmem:[%s3 + $0x1e8] sm:$0xff]
  %v223 = vld [vmem:[%s3 + $0x1f0] sm:$0xff]
  %v224 = vld [vmem:[%s3 + $0x1f8] sm:$0xff]
  %v225 = vld [vmem:[%s3 + $0x200] sm:$0xff]
  %v226 = vld [vmem:[%s3 + $0x208] sm:$0xff]
  %v227 = vld [vmem:[%s3 + $0x210] sm:$0xff]
  %v228 = vld [vmem:[%s3 + $0x218] sm:$0xff]
  %v229 = vld [vmem:[%s3 + $0x220] sm:$0xff]
  %v230 = vld [vmem:[%s3 + $0x228] sm:$0xff]
  %v231 = vld [vmem:[%s3 + $0x230] sm:$0xff]
  %v232 = vld [vmem:[%s3 + $0x238] sm:$0xff]
  %v233 = vld [vmem:[%s3 + $0x240] sm:$0xff]
  %v234 = vld [vmem:[%s3 + $0x248] sm:$0xff]
  %v235 = vld [vmem:[%s3 + $0x250] sm:$0xff]
  %v236 = vld [vmem:[%s3 + $0x258] sm:$0xff]
  %v237 = vld [vmem:[%s3 + $0x260] sm:$0xff]
  %v238 = vld [vmem:[%s3 + $0x268] sm:$0xff]
  %v239 = vld [vmem:[%s3 + $0x270] sm:$0xff]
  %v240 = vld [vmem:[%s3 + $0x278] sm:$0xff]
  %v241 = vld [vmem:[%s3 + $0x280] sm:$0xff]
  %v242 = vld [vmem:[%s3 + $0x288] sm:$0xff]
  %v243 = vld [vmem:[%s3 + $0x290] sm:$0xff]
  %v244 = vld [vmem:[%s3 + $0x298] sm:$0xff]
  %v245 = vld [vmem:[%s3 + $0x2a0] sm:$0xff]
  %v246 = vld [vmem:[%s3 + $0x2a8] sm:$0xff]
  %v247 = vld [vmem:[%s3 + $0x2b0] sm:$0xff]
  %v248 = vld [vmem:[%s3 + $0x2b8] sm:$0xff]
  %v249 = vld [vmem:[%s3 + $0x2c0] sm:$0xff]
  %v250 = vld [vmem:[%s3 + $0x2c8] sm:$0xff]
  %v251 = vld [vmem:[%s3 + $0x2d0] sm:$0xff]
  %v252 = vld [vmem:[%s3 + $0x2d8] sm:$0xff]
  %v253 = vld [vmem:[%s3 + $0x2e0] sm:$0xff]
  %v254 = vld [vmem:[%s3 + $0x2e8] sm:$0xff]
  %v255 = vld [vmem:[%s3 + $0x2f0] sm:$0xff]
  %v256 = vld [vmem:[%s3 + $0x2f8] sm:$0xff]
  %v257 = vld [vmem:[%s4] sm:$0x7]
  %v259 = vlaneseq
  %v260 = vshrl.u32 %v259, 7
  %v261 = vsub.s32 0, %v260
  %v262 = vrot.slane %v257, %v261
  %v263 = vlaneseq
  %v264 = vshrl.u32 %v263, 7
  %v265 = vsub.s32 1, %v264
  %v266 = vrot.slane %v257, %v265
  %v267 = vlaneseq
  %v268 = vshrl.u32 %v267, 7
  %v269 = vsub.s32 2, %v268
  %v270 = vrot.slane %v257, %v269
  %274 = vmatprep.subr.mxu0 %v162
  %275 = vmatpush1.msra.mxu0 %v161
  %276 = vmatprep.subr.mxu0 %v165
  %277 = vmatpush1.msra.mxu0 %v164
  %278 = vmatprep.subr.mxu0 %v168
  %279 = vmatpush1.msra.mxu0 %v167
  %280 = vmatprep.subr.mxu0 %v171
  %281 = vmatpush1.msra.mxu0 %v170
  %282 = vmatprep.subr.mxu0 %v174
  %283 = vmatpush1.msra.mxu0 %v173
  %284 = vmatprep.subr.mxu0 %v177
  %285 = vmatpush1.msra.mxu0 %v176
  %286 = vmatprep.subr.mxu0 %v180
  %287 = vmatpush1.msra.mxu0 %v179
  %288 = vmatprep.subr.mxu0 %v183
  %289 = vmatpush1.msra.mxu0 %v182
  %290 = vmatprep.subr.mxu0 %v186
  %291 = vmatpush1.msra.mxu0 %v185
  %292 = vmatprep.subr.mxu0 %v189
  %293 = vmatpush1.msra.mxu0 %v188
  %294 = vmatprep.subr.mxu0 %v192
  %295 = vmatpush1.msra.mxu0 %v191
  %296 = vmatprep.subr.mxu0 %v195
  %297 = vmatpush1.msra.mxu0 %v194
  %298 = vmatprep.subr.mxu0 %v198
  %299 = vmatpush1.msra.mxu0 %v197
  %300 = vmatprep.subr.mxu0 %v201
  %301 = vmatpush1.msra.mxu0 %v200
  %302 = vmatprep.subr.mxu0 %v204
  %303 = vmatpush1.msra.mxu0 %v203
  %304 = vmatprep.subr.mxu0 %v207
  %305 = vmatpush1.msra.mxu0 %v206
  %306 = vmatprep.subr.mxu0 %v210
  %307 = vmatpush1.msra.mxu0 %v209
  %308 = vmatprep.subr.mxu0 %v213
  %309 = vmatpush1.msra.mxu0 %v212
  %310 = vmatprep.subr.mxu0 %v216
  %311 = vmatpush1.msra.mxu0 %v215
  %312 = vmatprep.subr.mxu0 %v219
  %313 = vmatpush1.msra.mxu0 %v218
  %314 = vmatprep.subr.mxu0 %v222
  %315 = vmatpush1.msra.mxu0 %v221
  %316 = vmatprep.subr.mxu0 %v225
  %317 = vmatpush1.msra.mxu0 %v224
  %318 = vmatprep.subr.mxu0 %v228
  %319 = vmatpush1.msra.mxu0 %v227
  %320 = vmatprep.subr.mxu0 %v231
  %321 = vmatpush1.msra.mxu0 %v230
  %322 = vmatprep.subr.mxu0 %v234
  %323 = vmatpush1.msra.mxu0 %v233
  %324 = vmatprep.subr.mxu0 %v237
  %325 = vmatpush1.msra.mxu0 %v236
  %326 = vmatprep.subr.mxu0 %v240
  %327 = vmatpush1.msra.mxu0 %v239
  %328 = vmatprep.subr.mxu0 %v243
  %329 = vmatpush1.msra.mxu0 %v242
  %330 = vmatprep.subr.mxu0 %v246
  %331 = vmatpush1.msra.mxu0 %v245
  %332 = vmatprep.subr.mxu0 %v249
  %333 = vmatpush1.msra.mxu0 %v248
  %334 = vmatprep.subr.mxu0 %v252
  %335 = vmatpush1.msra.mxu0 %v251
  %336 = vmatprep.subr.mxu0 %v255
  %337 = vmatpush1.msra.mxu0 %v254
  %338 = vmatprep.mubr.f32.mxu0 %v160
  %339 = vmatmul.mubr.f32.gmra.mrb[0].mxu0 %v159
  %v340 = vpop.f32.mrb[0].mxu0
  %v341 = vadd.f32 %v262, %v340
  %v342 = vpop.f32.mrb[0].mxu0
  %v343 = vadd.f32 %v266, %v342
  %344 = vdwg.mxu0
  %345 = vmatprep.subr.mxu0 0.0
  %346 = vmatpush1.msra.mxu0 %v163
  %347 = vmatprep.subr.mxu0 0.0
  %348 = vmatpush1.msra.mxu0 %v166
  %349 = vmatprep.subr.mxu0 0.0
  %350 = vmatpush1.msra.mxu0 %v169
  %351 = vmatprep.subr.mxu0 0.0
  %352 = vmatpush1.msra.mxu0 %v172
  %353 = vmatprep.subr.mxu0 0.0
  %354 = vmatpush1.msra.mxu0 %v175
  %355 = vmatprep.subr.mxu0 0.0
  %356 = vmatpush1.msra.mxu0 %v178
  %357 = vmatprep.subr.mxu0 0.0
  %358 = vmatpush1.msra.mxu0 %v181
  %359 = vmatprep.subr.mxu0 0.0
  %360 = vmatpush1.msra.mxu0 %v184
  %361 = vmatprep.subr.mxu0 0.0
  %362 = vmatpush1.msra.mxu0 %v187
  %363 = vmatprep.subr.mxu0 0.0
  %364 = vmatpush1.msra.mxu0 %v190
  %365 = vmatprep.subr.mxu0 0.0
  %366 = vmatpush1.msra.mxu0 %v193
  %367 = vmatprep.subr.mxu0 0.0
  %368 = vmatpush1.msra.mxu0 %v196
  %369 = vmatprep.subr.mxu0 0.0
  %370 = vmatpush1.msra.mxu0 %v199
  %371 = vmatprep.subr.mxu0 0.0
  %372 = vmatpush1.msra.mxu0 %v202
  %373 = vmatprep.subr.mxu0 0.0
  %374 = vmatpush1.msra.mxu0 %v205
  %375 = vmatprep.subr.mxu0 0.0
  %376 = vmatpush1.msra.mxu0 %v208
  %377 = vmatprep.subr.mxu0 0.0
  %378 = vmatpush1.msra.mxu0 %v211
  %379 = vmatprep.subr.mxu0 0.0
  %380 = vmatpush1.msra.mxu0 %v214
  %381 = vmatprep.subr.mxu0 0.0
  %382 = vmatpush1.msra.mxu0 %v217
  %383 = vmatprep.subr.mxu0 0.0
  %384 = vmatpush1.msra.mxu0 %v220
  %385 = vmatprep.subr.mxu0 0.0
  %386 = vmatpush1.msra.mxu0 %v223
  %387 = vmatprep.subr.mxu0 0.0
  %388 = vmatpush1.msra.mxu0 %v226
  %389 = vmatprep.subr.mxu0 0.0
  %390 = vmatpush1.msra.mxu0 %v229
  %391 = vmatprep.subr.mxu0 0.0
  %392 = vmatpush1.msra.mxu0 %v232
  %393 = vmatprep.subr.mxu0 0.0
  %394 = vmatpush1.msra.mxu0 %v235
  %395 = vmatprep.subr.mxu0 0.0
  %396 = vmatpush1.msra.mxu0 %v238
  %397 = vmatprep.subr.mxu0 0.0
  %398 = vmatpush1.msra.mxu0 %v241
  %399 = vmatprep.subr.mxu0 0.0
  %400 = vmatpush1.msra.mxu0 %v244
  %401 = vmatprep.subr.mxu0 0.0
  %402 = vmatpush1.msra.mxu0 %v247
  %403 = vmatprep.subr.mxu0 0.0
  %404 = vmatpush1.msra.mxu0 %v250
  %405 = vmatprep.subr.mxu0 0.0
  %406 = vmatpush1.msra.mxu0 %v253
  %407 = vmatprep.subr.mxu0 0.0
  %408 = vmatpush1.msra.mxu0 %v256
  %409 = vmatprep.mubr.f32.mxu0 %v160
  %410 = vmatmul.mubr.f32.gmra.mrb[0].mxu0 %v159
  %v411 = vpop.f32.mrb[0].mxu0
  %v412 = vadd.f32 %v270, %v411
  %v413 = vpop.f32.mrb[0].mxu0
  %414 = vdwg.mxu0
  %v415 = vmax.f32 %v341, 0.0
  %v416 = vmax.f32 %v343, 0.0
  %v417 = vmax.f32 %v412, 0.0
  %v418 = vld [vmem:[%s5] sm:$0xff]
  %v419 = vld [vmem:[%s5 + $0x8] sm:$0xff]
  %v420 = vld [vmem:[%s5 + $0x10] sm:$0xff]
  %v421 = vld [vmem:[%s5 + $0x18] sm:$0xff]
  %v422 = vld [vmem:[%s5 + $0x20] sm:$0xff]
  %v423 = vld [vmem:[%s5 + $0x28] sm:$0xff]
  %v424 = vld [vmem:[%s5 + $0x30] sm:$0xff]
  %v425 = vld [vmem:[%s5 + $0x38] sm:$0xff]
  %v426 = vld [vmem:[%s5 + $0x40] sm:$0xff]
  %v427 = vld [vmem:[%s5 + $0x48] sm:$0xff]
  %v428 = vld [vmem:[%s5 + $0x50] sm:$0xff]
  %v429 = vld [vmem:[%s5 + $0x58] sm:$0xff]
  %v430 = vld [vmem:[%s5 + $0x60] sm:$0xff]
  %v431 = vld [vmem:[%s5 + $0x68] sm:$0xff]
  %v432 = vld [vmem:[%s5 + $0x70] sm:$0xff]
  %v433 = vld [vmem:[%s5 + $0x78] sm:$0xff]
  %v434 = vld [vmem:[%s5 + $0x80] sm:$0xff]
  %v435 = vld [vmem:[%s5 + $0x88] sm:$0xff]
  %v436 = vld [vmem:[%s5 + $0x90] sm:$0xff]
  %v437 = vld [vmem:[%s5 + $0x98] sm:$0xff]
  %v438 = vld [vmem:[%s5 + $0xa0] sm:$0xff]
  %v439 = vld [vmem:[%s5 + $0xa8] sm:$0xff]
  %v440 = vld [vmem:[%s5 + $0xb0] sm:$0xff]
  %v441 = vld [vmem:[%s5 + $0xb8] sm:$0xff]
  %v442 = vld [vmem:[%s5 + $0xc0] sm:$0xff]
  %v443 = vld [vmem:[%s5 + $0xc8] sm:$0xff]
  %v444 = vld [vmem:[%s5 + $0xd0] sm:$0xff]
  %v445 = vld [vmem:[%s5 + $0xd8] sm:$0xff]
  %v446 = vld [vmem:[%s5 + $0xe0] sm:$0xff]
  %v447 = vld [vmem:[%s5 + $0xe8] sm:$0xff]
  %v448 = vld [vmem:[%s5 + $0xf0] sm:$0xff]
  %v449 = vld [vmem:[%s5 + $0xf8] sm:$0xff]
  %v450 = vld [vmem:[%s5 + $0x100] sm:$0xff]
  %v451 = vld [vmem:[%s5 + $0x108] sm:$0xff]
  %v452 = vld [vmem:[%s5 + $0x110] sm:$0xff]
  %v453 = vld [vmem:[%s5 + $0x118] sm:$0xff]
  %v454 = vld [vmem:[%s6] sm:$0x1]
  %v456 = vlaneseq
  %v457 = vshrl.u32 %v456, 7
  %v458 = vsub.s32 0, %v457
  %v459 = vrot.slane %v454, %v458
  %vm461 = vcmask 261120
  %v463 = vsel %vm461, %v417, 0
  %465 = vmatprep.subr.mxu0 0.0
  %466 = vmatpush1.msra.mxu0 %v418
  %467 = vmatprep.subr.mxu0 0.0
  %468 = vmatpush1.msra.mxu0 %v419
  %469 = vmatprep.subr.mxu0 0.0
  %470 = vmatpush1.msra.mxu0 %v420
  %471 = vmatprep.subr.mxu0 0.0
  %472 = vmatpush1.msra.mxu0 %v421
  %473 = vmatprep.subr.mxu0 0.0
  %474 = vmatpush1.msra.mxu0 %v422
  %475 = vmatprep.subr.mxu0 0.0
  %476 = vmatpush1.msra.mxu0 %v423
  %477 = vmatprep.subr.mxu0 0.0
  %478 = vmatpush1.msra.mxu0 %v424
  %479 = vmatprep.subr.mxu0 0.0
  %480 = vmatpush1.msra.mxu0 %v425
  %481 = vmatprep.subr.mxu0 0.0
  %482 = vmatpush1.msra.mxu0 %v426
  %483 = vmatprep.subr.mxu0 0.0
  %484 = vmatpush1.msra.mxu0 %v427
  %485 = vmatprep.subr.mxu0 0.0
  %486 = vmatpush1.msra.mxu0 %v428
  %487 = vmatprep.subr.mxu0 0.0
  %488 = vmatpush1.msra.mxu0 %v429
  %489 = vmatprep.subr.mxu0 0.0
  %490 = vmatpush1.msra.mxu0 %v430
  %491 = vmatprep.subr.mxu0 0.0
  %492 = vmatpush1.msra.mxu0 %v431
  %493 = vmatprep.subr.mxu0 0.0
  %494 = vmatpush1.msra.mxu0 %v432
  %495 = vmatprep.subr.mxu0 0.0
  %496 = vmatpush1.msra.mxu0 %v433
  %497 = vmatprep.subr.mxu0 0.0
  %498 = vmatpush1.msra.mxu0 %v434
  %499 = vmatprep.subr.mxu0 0.0
  %500 = vmatpush1.msra.mxu0 %v435
  %501 = vmatprep.subr.mxu0 0.0
  %502 = vmatpush1.msra.mxu0 %v436
  %503 = vmatprep.subr.mxu0 0.0
  %504 = vmatpush1.msra.mxu0 %v437
  %505 = vmatprep.subr.mxu0 0.0
  %506 = vmatpush1.msra.mxu0 %v438
  %507 = vmatprep.subr.mxu0 0.0
  %508 = vmatpush1.msra.mxu0 %v439
  %509 = vmatprep.subr.mxu0 0.0
  %510 = vmatpush1.msra.mxu0 %v440
  %511 = vmatprep.subr.mxu0 0.0
  %512 = vmatpush1.msra.mxu0 %v441
  %513 = vmatprep.subr.mxu0 0.0
  %514 = vmatpush1.msra.mxu0 %v442
  %515 = vmatprep.subr.mxu0 0.0
  %516 = vmatpush1.msra.mxu0 %v443
  %517 = vmatprep.subr.mxu0 0.0
  %518 = vmatpush1.msra.mxu0 %v444
  %519 = vmatprep.subr.mxu0 0.0
  %520 = vmatpush1.msra.mxu0 %v445
  %521 = vmatprep.subr.mxu0 0.0
  %522 = vmatpush1.msra.mxu0 %v446
  %523 = vmatprep.subr.mxu0 0.0
  %524 = vmatpush1.msra.mxu0 %v447
  %525 = vmatprep.subr.mxu0 0.0
  %526 = vmatpush1.msra.mxu0 %v448
  %527 = vmatprep.subr.mxu0 0.0
  %528 = vmatpush1.msra.mxu0 %v449
  %529 = vmatprep.mubr.f32.mxu0 %v416
  %530 = vmatmul.mubr.f32.gmra.mrb[0].mxu0 %v415
  %v531 = vpop.f32.mrb[0].mxu0
  %v532 = vadd.f32 %v459, %v531
  %v533 = vpop.f32.mrb[0].mxu0
  %534 = vdwg.mxu0
  %535 = vmatprep.subr.mxu0 0.0
  %536 = vmatpush1.msra.mxu0 %v450
  %537 = vmatprep.subr.mxu0 0.0
  %538 = vmatpush1.msra.mxu0 %v451
  %539 = vmatprep.subr.mxu0 0.0
  %540 = vmatpush1.msra.mxu0 %v452
  %541 = vmatprep.subr.mxu0 0.0
  %542 = vmatpush1.msra.mxu0 %v453
  %543 = vmatprep.subr.mxu0 0.0
  %544 = vmatpush1.msra.mxu0 0.0
  %545 = vmatprep.subr.mxu0 0.0
  %546 = vmatpush1.msra.mxu0 0.0
  %547 = vmatprep.subr.mxu0 0.0
  %548 = vmatpush1.msra.mxu0 0.0
  %549 = vmatprep.subr.mxu0 0.0
  %550 = vmatpush1.msra.mxu0 0.0
  %551 = vmatprep.subr.mxu0 0.0
  %552 = vmatpush1.msra.mxu0 0.0
  %553 = vmatprep.subr.mxu0 0.0
  %554 = vmatpush1.msra.mxu0 0.0
  %555 = vmatprep.subr.mxu0 0.0
  %556 = vmatpush1.msra.mxu0 0.0
  %557 = vmatprep.subr.mxu0 0.0
  %558 = vmatpush1.msra.mxu0 0.0
  %559 = vmatprep.subr.mxu0 0.0
  %560 = vmatpush1.msra.mxu0 0.0
  %561 = vmatprep.subr.mxu0 0.0
  %562 = vmatpush1.msra.mxu0 0.0
  %563 = vmatprep.subr.mxu0 0.0
  %564 = vmatpush1.msra.mxu0 0.0
  %565 = vmatprep.subr.mxu0 0.0
  %566 = vmatpush1.msra.mxu0 0.0
  %567 = vmatprep.subr.mxu0 0.0
  %568 = vmatpush1.msra.mxu0 0.0
  %569 = vmatprep.subr.mxu0 0.0
  %570 = vmatpush1.msra.mxu0 0.0
  %571 = vmatprep.subr.mxu0 0.0
  %572 = vmatpush1.msra.mxu0 0.0
  %573 = vmatprep.subr.mxu0 0.0
  %574 = vmatpush1.msra.mxu0 0.0
  %575 = vmatprep.subr.mxu0 0.0
  %576 = vmatpush1.msra.mxu0 0.0
  %577 = vmatprep.subr.mxu0 0.0
  %578 = vmatpush1.msra.mxu0 0.0
  %579 = vmatprep.subr.mxu0 0.0
  %580 = vmatpush1.msra.mxu0 0.0
  %581 = vmatprep.subr.mxu0 0.0
  %582 = vmatpush1.msra.mxu0 0.0
  %583 = vmatprep.subr.mxu0 0.0
  %584 = vmatpush1.msra.mxu0 0.0
  %585 = vmatprep.subr.mxu0 0.0
  %586 = vmatpush1.msra.mxu0 0.0
  %587 = vmatprep.subr.mxu0 0.0
  %588 = vmatpush1.msra.mxu0 0.0
  %589 = vmatprep.subr.mxu0 0.0
  %590 = vmatpush1.msra.mxu0 0.0
  %591 = vmatprep.subr.mxu0 0.0
  %592 = vmatpush1.msra.mxu0 0.0
  %593 = vmatprep.subr.mxu0 0.0
  %594 = vmatpush1.msra.mxu0 0.0
  %595 = vmatprep.subr.mxu0 0.0
  %596 = vmatpush1.msra.mxu0 0.0
  %597 = vmatprep.subr.mxu0 0.0
  %598 = vmatpush1.msra.mxu0 0.0
  %599 = vmatprep.mubr.f32.mxu0 0.0
  %600 = vmatmul.mubr.f32.gmra.mrb[0].mxu0 %v463
  %v601 = vpop.f32.mrb[0].mxu0
  %v602 = vadd.f32 %v532, %v601
  %v603 = vpop.f32.mrb[0].mxu0
  %604 = vdwg.mxu0
  %v605 = vmax.f32 %v602, 0.0
  %v606 = vld [vmem:[%s7] sm:$0xff]
  %v607 = vld [vmem:[%s7 + $0x8] sm:$0xff]
  %v608 = vld [vmem:[%s7 + $0x10] sm:$0xff]
  %v609 = vld [vmem:[%s7 + $0x18] sm:$0xff]
  %v610 = vld [vmem:[%s7 + $0x20] sm:$0xff]
  %v611 = vld [vmem:[%s7 + $0x28] sm:$0xff]
  %v612 = vld [vmem:[%s7 + $0x30] sm:$0xff]
  %v613 = vld [vmem:[%s7 + $0x38] sm:$0xff]
  %v614 = vld [vmem:[%s7 + $0x40] sm:$0xff]
  %v615 = vld [vmem:[%s7 + $0x48] sm:$0xff]
  %v616 = vld [vmem:[%s7 + $0x50] sm:$0xff]
  %v617 = vld [vmem:[%s7 + $0x58] sm:$0xff]
  %v618 = vld [vmem:[%s7 + $0x60] sm:$0xff]
  %v619 = vld [vmem:[%s7 + $0x68] sm:$0xff]
  %v620 = vld [vmem:[%s7 + $0x70] sm:$0xff]
  %v621 = vld [vmem:[%s7 + $0x78] sm:$0xff]
  %v622 = vld [vmem:[%s8] sm:$0x1]
  %v624 = vlaneseq
  %v625 = vshrl.u32 %v624, 7
  %v626 = vsub.s32 0, %v625
  %v627 = vrot.slane %v622, %v626
  %629 = vmatprep.subr.mxu0 0.0
  %630 = vmatpush1.msra.mxu0 %v606
  %631 = vmatprep.subr.mxu0 0.0
  %632 = vmatpush1.msra.mxu0 %v607
  %633 = vmatprep.subr.mxu0 0.0
  %634 = vmatpush1.msra.mxu0 %v608
  %635 = vmatprep.subr.mxu0 0.0
  %636 = vmatpush1.msra.mxu0 %v609
  %637 = vmatprep.subr.mxu0 0.0
  %638 = vmatpush1.msra.mxu0 %v610
  %639 = vmatprep.subr.mxu0 0.0
  %640 = vmatpush1.msra.mxu0 %v611
  %641 = vmatprep.subr.mxu0 0.0
  %642 = vmatpush1.msra.mxu0 %v612
  %643 = vmatprep.subr.mxu0 0.0
  %644 = vmatpush1.msra.mxu0 %v613
  %645 = vmatprep.subr.mxu0 0.0
  %646 = vmatpush1.msra.mxu0 %v614
  %647 = vmatprep.subr.mxu0 0.0
  %648 = vmatpush1.msra.mxu0 %v615
  %649 = vmatprep.subr.mxu0 0.0
  %650 = vmatpush1.msra.mxu0 %v616
  %651 = vmatprep.subr.mxu0 0.0
  %652 = vmatpush1.msra.mxu0 %v617
  %653 = vmatprep.subr.mxu0 0.0
  %654 = vmatpush1.msra.mxu0 %v618
  %655 = vmatprep.subr.mxu0 0.0
  %656 = vmatpush1.msra.mxu0 %v619
  %657 = vmatprep.subr.mxu0 0.0
  %658 = vmatpush1.msra.mxu0 %v620
  %659 = vmatprep.subr.mxu0 0.0
  %660 = vmatpush1.msra.mxu0 %v621
  %661 = vmatprep.subr.mxu0 0.0
  %662 = vmatpush1.msra.mxu0 0.0
  %663 = vmatprep.subr.mxu0 0.0
  %664 = vmatpush1.msra.mxu0 0.0
  %665 = vmatprep.subr.mxu0 0.0
  %666 = vmatpush1.msra.mxu0 0.0
  %667 = vmatprep.subr.mxu0 0.0
  %668 = vmatpush1.msra.mxu0 0.0
  %669 = vmatprep.subr.mxu0 0.0
  %670 = vmatpush1.msra.mxu0 0.0
  %671 = vmatprep.subr.mxu0 0.0
  %672 = vmatpush1.msra.mxu0 0.0
  %673 = vmatprep.subr.mxu0 0.0
  %674 = vmatpush1.msra.mxu0 0.0
  %675 = vmatprep.subr.mxu0 0.0
  %676 = vmatpush1.msra.mxu0 0.0
  %677 = vmatprep.subr.mxu0 0.0
  %678 = vmatpush1.msra.mxu0 0.0
  %679 = vmatprep.subr.mxu0 0.0
  %680 = vmatpush1.msra.mxu0 0.0
  %681 = vmatprep.subr.mxu0 0.0
  %682 = vmatpush1.msra.mxu0 0.0
  %683 = vmatprep.subr.mxu0 0.0
  %684 = vmatpush1.msra.mxu0 0.0
  %685 = vmatprep.subr.mxu0 0.0
  %686 = vmatpush1.msra.mxu0 0.0
  %687 = vmatprep.subr.mxu0 0.0
  %688 = vmatpush1.msra.mxu0 0.0
  %689 = vmatprep.subr.mxu0 0.0
  %690 = vmatpush1.msra.mxu0 0.0
  %691 = vmatprep.subr.mxu0 0.0
  %692 = vmatpush1.msra.mxu0 0.0
  %693 = vmatprep.mubr.f32.mxu0 0.0
  %694 = vmatmul.mubr.f32.gmra.mrb[0].mxu0 %v605
  %v695 = vpop.f32.mrb[0].mxu0
  %v696 = vadd.f32 %v627, %v695
  %v697 = vpop.f32.mrb[0].mxu0
  %698 = vdwg.mxu0
  %v699 = vmax.f32 %v696, 0.0
  %v700 = vld [vmem:[%s9] sm:$0xff]
  %v701 = vld [vmem:[%s9 + $0x8] sm:$0xff]
  %v702 = vld [vmem:[%s9 + $0x10] sm:$0xff]
  %v703 = vld [vmem:[%s9 + $0x18] sm:$0xff]
  %v704 = vld [vmem:[%s9 + $0x20] sm:$0xff]
  %v705 = vld [vmem:[%s9 + $0x28] sm:$0xff]
  %v706 = vld [vmem:[%s9 + $0x30] sm:$0xff]
  %v707 = vld [vmem:[%s9 + $0x38] sm:$0xff]
  %v708 = vld [vmem:[%s9 + $0x40] sm:$0xff]
  %v709 = vld [vmem:[%s9 + $0x48] sm:$0xff]
  %v710 = vld [vmem:[%s9 + $0x50] sm:$0xff]
  %v711 = vld [vmem:[%s9 + $0x58] sm:$0xff]
  %v712 = vld [vmem:[%s9 + $0x60] sm:$0xff]
  %v713 = vld [vmem:[%s9 + $0x68] sm:$0xff]
  %v714 = vld [vmem:[%s9 + $0x70] sm:$0xff]
  %v715 = vld [vmem:[%s9 + $0x78] sm:$0xff]
  %v716 = vld [vmem:[%s10] sm:$0x1]
  %v718 = vlaneseq
  %v719 = vshrl.u32 %v718, 7
  %v720 = vsub.s32 0, %v719
  %v721 = vrot.slane %v716, %v720
  %723 = vmatprep.subr.mxu0 0.0
  %724 = vmatpush1.msra.mxu0 %v700
  %725 = vmatprep.subr.mxu0 0.0
  %726 = vmatpush1.msra.mxu0 %v701
  %727 = vmatprep.subr.mxu0 0.0
  %728 = vmatpush1.msra.mxu0 %v702
  %729 = vmatprep.subr.mxu0 0.0
  %730 = vmatpush1.msra.mxu0 %v703
  %731 = vmatprep.subr.mxu0 0.0
  %732 = vmatpush1.msra.mxu0 %v704
  %733 = vmatprep.subr.mxu0 0.0
  %734 = vmatpush1.msra.mxu0 %v705
  %735 = vmatprep.subr.mxu0 0.0
  %736 = vmatpush1.msra.mxu0 %v706
  %737 = vmatprep.subr.mxu0 0.0
  %738 = vmatpush1.msra.mxu0 %v707
  %739 = vmatprep.subr.mxu0 0.0
  %740 = vmatpush1.msra.mxu0 %v708
  %741 = vmatprep.subr.mxu0 0.0
  %742 = vmatpush1.msra.mxu0 %v709
  %743 = vmatprep.subr.mxu0 0.0
  %744 = vmatpush1.msra.mxu0 %v710
  %745 = vmatprep.subr.mxu0 0.0
  %746 = vmatpush1.msra.mxu0 %v711
  %747 = vmatprep.subr.mxu0 0.0
  %748 = vmatpush1.msra.mxu0 %v712
  %749 = vmatprep.subr.mxu0 0.0
  %750 = vmatpush1.msra.mxu0 %v713
  %751 = vmatprep.subr.mxu0 0.0
  %752 = vmatpush1.msra.mxu0 %v714
  %753 = vmatprep.subr.mxu0 0.0
  %754 = vmatpush1.msra.mxu0 %v715
  %755 = vmatprep.subr.mxu0 0.0
  %756 = vmatpush1.msra.mxu0 0.0
  %757 = vmatprep.subr.mxu0 0.0
  %758 = vmatpush1.msra.mxu0 0.0
  %759 = vmatprep.subr.mxu0 0.0
  %760 = vmatpush1.msra.mxu0 0.0
  %761 = vmatprep.subr.mxu0 0.0
  %762 = vmatpush1.msra.mxu0 0.0
  %763 = vmatprep.subr.mxu0 0.0
  %764 = vmatpush1.msra.mxu0 0.0
  %765 = vmatprep.subr.mxu0 0.0
  %766 = vmatpush1.msra.mxu0 0.0
  %767 = vmatprep.subr.mxu0 0.0
  %768 = vmatpush1.msra.mxu0 0.0
  %769 = vmatprep.subr.mxu0 0.0
  %770 = vmatpush1.msra.mxu0 0.0
  %771 = vmatprep.subr.mxu0 0.0
  %772 = vmatpush1.msra.mxu0 0.0
  %773 = vmatprep.subr.mxu0 0.0
  %774 = vmatpush1.msra.mxu0 0.0
  %775 = vmatprep.subr.mxu0 0.0
  %776 = vmatpush1.msra.mxu0 0.0
  %777 = vmatprep.subr.mxu0 0.0
  %778 = vmatpush1.msra.mxu0 0.0
  %779 = vmatprep.subr.mxu0 0.0
  %780 = vmatpush1.msra.mxu0 0.0
  %781 = vmatprep.subr.mxu0 0.0
  %782 = vmatpush1.msra.mxu0 0.0
  %783 = vmatprep.subr.mxu0 0.0
  %784 = vmatpush1.msra.mxu0 0.0
  %785 = vmatprep.subr.mxu0 0.0
  %786 = vmatpush1.msra.mxu0 0.0
  %787 = vmatprep.mubr.f32.mxu0 0.0
  %788 = vmatmul.mubr.f32.gmra.mrb[0].mxu0 %v699
  %v789 = vpop.f32.mrb[0].mxu0
  %v790 = vadd.f32 %v721, %v789
  %v791 = vpop.f32.mrb[0].mxu0
  %792 = vdwg.mxu0
  %793 = vmax.xlane.f32.xlu0 %v790
  %v794 = vpop.xlane.xlu0 %793
  %v795 = vsub.f32 %v790, %v794
  %v796 = vmul.f32 %v795, 1.442695
  %v797 = vpow.pop %v796
  %798 = vadd.xlane.f32.xlu0 %v797
  %v799 = vpop.xlane.xlu0 %798
  %v800 = vrcp.pop %v799
  %v801 = vmul.f32 %v797, %v800
  %802 = vst [vmem:[%s11] sm:$0xff] %v801
  // Predicated region
  $region46: #{net_forward.1} parent=0 // pred_check
    _
  $region47: #{net_forward.1} parent=0 // pred_check_branch
    %804 = sbr.rel (0) target = $region49
  $region48: #{net_forward.1} parent=0 // pred_region
    _
  $region49: #{net_forward.1} parent=0 // pred_fallthru
    _
  // Predicated region
  $region50: #{net_forward.1} parent=0 // pred_check
    _
  $region51: #{net_forward.1} parent=0 // pred_check_branch
    %806 = sbr.rel (0) target = $region53
  $region52: #{net_forward.1} parent=0 // pred_region
    _
  $region53: #{net_forward.1} parent=0 // pred_fallthru
    _

</llo_original>
